<compile_context>
chip_gen: v7x
topology: tpu7x:2x2x1
jax: 0.10.0
libtpu: 0.0.40
codegen_flags: <defaults>
</compile_context>

<pallas_src>
import jax
import jax.numpy as jnp
from jax.experimental import pallas as pl
from jax.experimental.pallas import tpu as pltpu


def _round_up(x: int, m: int) -> int:
    return ((x + m - 1) // m) * m


def _embed_gather_kernel(ids_ref, table_ref, out_ref):
    """Gather T embedding rows from the VMEM-resident table via one-hot matmul.

    ids_ref:   (T, 1) int32 token ids for this block (VMEM).
    table_ref: (V, D) embedding table, resident in VMEM across the grid.
    out_ref:   (T, D) output tile.
    """
    T = out_ref.shape[0]
    V = table_ref.shape[0]
    ids = ids_ref[...]  # (T, 1)
    # one-hot (T, V): row t has a single 1.0 at column ids[t]
    onehot = (jax.lax.broadcasted_iota(jnp.int32, (T, V), dimension=1) == ids)
    onehot = onehot.astype(table_ref.dtype)
    # MXU gather: (T, V) @ (V, D) -> (T, D), f32 accumulation.
    out_ref[...] = jnp.dot(
        onehot, table_ref[...], preferred_element_type=jnp.float32
    ).astype(out_ref.dtype)


def embedding_lookup(token_ids: jax.Array, table: jax.Array,
                     block_tokens: int = 256) -> jax.Array:
    """Pallas embedding lookup: returns table[token_ids].

    Args:
      token_ids: int array of shape (B, S) with values in [0, V).
      table:     float32 array of shape (V, D).

    Returns:
      float32 array of shape (B, S, D) == table[token_ids] (nn.Embedding semantics).
    """
    B, S = token_ids.shape
    V, D = table.shape
    N = B * S

    # Tokens per grid step: a multiple of 8 (sublane), capped by the (padded)
    # token count so tiny inputs stay a single block.
    T = min(block_tokens, _round_up(N, 8))
    N_pad = _round_up(N, T)
    num_blocks = N_pad // T

    flat_ids = token_ids.reshape(N).astype(jnp.int32)
    # Pad with id 0 (a valid row); padded rows are sliced off afterwards.
    ids_col = jnp.pad(flat_ids, (0, N_pad - N)).reshape(N_pad, 1)

    out_dtype = table.dtype
    cost = pl.CostEstimate(
        flops=2 * N_pad * V * D,                      # one-hot matmul
        transcendentals=0,
        bytes_accessed=(N_pad * 4                      # ids in
                        + V * D * table.dtype.itemsize  # table in (once)
                        + N_pad * D * jnp.dtype(out_dtype).itemsize),  # out
    )

    out_flat = pl.pallas_call(
        _embed_gather_kernel,
        out_shape=jax.ShapeDtypeStruct((N_pad, D), out_dtype),
        grid_spec=pltpu.PrefetchScalarGridSpec(
            num_scalar_prefetch=0,
            grid=(num_blocks,),
            in_specs=[
                # (T, 1) block of token ids for this step.
                pl.BlockSpec((T, 1), lambda i: (i, 0)),
                # Full (V, D) table, same block every step -> VMEM resident,
                # DMA'd from HBM exactly once.
                pl.BlockSpec((V, D), lambda i: (0, 0)),
            ],
            out_specs=pl.BlockSpec((T, D), lambda i: (i, 0)),
        ),
        compiler_params=pltpu.CompilerParams(
            dimension_semantics=("parallel",),
        ),
        cost_estimate=cost,
    )(ids_col, table)

    return out_flat[:N].reshape(B, S, D)


class Embedder1:
    """JAX/Pallas port of the PyTorch Embedder1 module."""

    def __init__(self, vocab_size: int, embed_dim: int, key: jax.Array):
        # nn.Embedding default init is N(0, 1).
        self.table = jax.random.normal(key, (vocab_size, embed_dim), dtype=jnp.float32)

    def __call__(self, inputs: jax.Array) -> jax.Array:
        return embedding_lookup(inputs, self.table)


if __name__ == "__main__":
    # Shapes consistent with the module: batch=2, seq=8,
    # len(rsc.vocab_in)=64, cfg.embed_dim=32.
    B, S, V, D = 2, 8, 64, 32

    key = jax.random.PRNGKey(0)
    k_tab, k_ids, k_ids2 = jax.random.split(key, 3)

    embedder = Embedder1(vocab_size=V, embed_dim=D, key=k_tab)

    # Small check (single token block).
    token_ids = jax.random.randint(k_ids, (B, S), minval=0, maxval=V, dtype=jnp.int32)
    out = jax.block_until_ready(embedder(token_ids))
    ref = jnp.take(embedder.table, token_ids, axis=0)
    assert out.shape == (B, S, D), out.shape
    assert jnp.allclose(out, ref), "Pallas embedding mismatch vs reference gather"

    # Second check exercising the multi-block grid + padding/slicing path.
    token_ids2 = jax.random.randint(k_ids2, (4, 100), minval=0, maxval=V, dtype=jnp.int32)
    out2 = jax.block_until_ready(embedder(token_ids2))
    ref2 = jnp.take(embedder.table, token_ids2, axis=0)
    assert out2.shape == (4, 100, D), out2.shape
    assert jnp.allclose(out2, ref2), "Pallas embedding mismatch (multi-block path)"

    print("KERNEL_OK")
</pallas_src>

<mosaic_0001>
module attributes {stable_mosaic.version = 11 : i64} {
  func.func @_embed_gather_kernel(%arg0: i32, %arg1: memref<16x1xi32, #tpu.memory_space<vmem>>, %arg2: memref<64x32xf32, #tpu.memory_space<vmem>>, %arg3: memref<16x32xf32, #tpu.memory_space<vmem>>) attributes {dimension_semantics = [#tpu.dimension_semantics<parallel>], iteration_bounds = array<i64: 1>, scalar_prefetch = 0 : i64, scratch_operands = 0 : i64, tpu.core_type = #tpu.core_type<tc>, window_params = [{transform_indices = @transform_0, window_bounds = array<i64: 16, 1>}, {pipeline_mode = #tpu.pipeline_mode<synchronous>, transform_indices = @transform_1, window_bounds = array<i64: 64, 32>}, {transform_indices = @transform_2, window_bounds = array<i64: 16, 32>}]} {
    %c0 = arith.constant 0 : index
    %c0_0 = arith.constant 0 : index
    %0 = vector.load %arg1[%c0, %c0_0] : memref<16x1xi32, #tpu.memory_space<vmem>>, vector<16x1xi32>
    %1 = tpu.iota {dimensions = array<i32: 1>} : vector<16x64xi32>
    %2 = vector.broadcast %0 : vector<16x1xi32> to vector<16x64xi32>
    %3 = arith.cmpi eq, %1, %2 : vector<16x64xi32>
    %4 = arith.extui %3 : vector<16x64xi1> to vector<16x64xi32>
    %5 = arith.sitofp %4 : vector<16x64xi32> to vector<16x64xf32>
    %c0_1 = arith.constant 0 : index
    %c0_2 = arith.constant 0 : index
    %6 = vector.load %arg2[%c0_1, %c0_2] : memref<64x32xf32, #tpu.memory_space<vmem>>, vector<64x32xf32>
    %cst = arith.constant dense<0.000000e+00> : vector<16x32xf32>
    %7 = tpu.matmul %5, %6, %cst {dimension_numbers = #tpu.dot_dimension_numbers<[1], [0], [0], [1], [0, 0, 1, 1], [], []>} : vector<16x64xf32>, vector<64x32xf32>, vector<16x32xf32> -> vector<16x32xf32>
    %c0_3 = arith.constant 0 : index
    %c0_4 = arith.constant 0 : index
    %8 = vector.load %arg3[%c0_3, %c0_4] : memref<16x32xf32, #tpu.memory_space<vmem>>, vector<16x32xf32>
    tpu.vector_store %arg3[%c0_3, %c0_4], %7 {strides = array<i32>} : memref<16x32xf32, #tpu.memory_space<vmem>>, vector<16x32xf32>,
    return
  }
  func.func @transform_0(%arg0: i32) -> (i32, i32) {
    %c0_i32 = arith.constant 0 : i32
    %c0_i32_0 = arith.constant 0 : i32
    return %arg0, %c0_i32 : i32, i32
  }
  func.func @transform_1(%arg0: i32) -> (i32, i32) {
    %c0_i32 = arith.constant 0 : i32
    %c0_i32_0 = arith.constant 0 : i32
    %c0_i32_1 = arith.constant 0 : i32
    return %c0_i32, %c0_i32_0 : i32, i32
  }
  func.func @transform_2(%arg0: i32) -> (i32, i32) {
    %c0_i32 = arith.constant 0 : i32
    %c0_i32_0 = arith.constant 0 : i32
    return %arg0, %c0_i32 : i32, i32
  }
}

</mosaic_0001>

<llo_original>
// kernel: tpu_custom_call.1
$region0: #{tpu_custom_call.1}
  #allocation0 [shape = 'u32[]', space=smem, size = 0x4, offset = 0x4, fixed_abs, tag = 'smem constant byte address 0x4 - core index']
  #allocation1 [shape = 'u32[144,128]{1,0:T(1,128)}', space=vmem, size = 0x12000, scoped, tag = 'internal scratch']
  %s0 = inlined_call_operand.vmem [shape: s32[16,1], index: 0, kind: input, shape index: {}]
  %s1 = inlined_call_operand.vmem [shape: f32[64,32], index: 1, kind: input, shape index: {}]
  %s2 = inlined_call_operand.hbm [shape: f32[16,32], index: 2, kind: output, shape index: {}]
  %s3 = sld [smem:[#allocation0]]
  $region18: #{tpu_custom_call.1} parent=0
    _
  %s5 = ssub.s32 1, %s3
  %s6 = scalar_select 0, %s5, %s3
  $region1: #{tpu_custom_call.1} parent=0
    #allocation2 [shape = 'u8[8192]{0}', space=vmem, size = 0x2000, scoped, tag = 'output window, operand 0, single buffered']
    #allocation3 [shape = 's32[1]{0}', space=sflag, size = 0x4, scoped, tag = 'scoped memory for tpu_custom_call.1']
    %7 = vsyncpa [#allocation3], 0
    // Predicated region
    $region2: #{tpu_custom_call.1} parent=1 // pred_check
      _
    $region3: #{tpu_custom_call.1} parent=1 // pred_check_branch
      %9 = sbr.rel (0) target = $region5
    $region4: #{tpu_custom_call.1} parent=1 // pred_region
      _
    $region5: #{tpu_custom_call.1} parent=1 // pred_fallthru
      _
    // Predicated region
    $region6: #{tpu_custom_call.1} parent=1 // pred_check
      _
    $region7: #{tpu_custom_call.1} parent=1 // pred_check_branch
      %11 = sbr.rel (0) target = $region9
    $region8: #{tpu_custom_call.1} parent=1 // pred_region
      _
    $region9: #{tpu_custom_call.1} parent=1 // pred_fallthru
      _
    %v12 = vld [vmem:[%s0] sm:$0xff]
    %v13 = vld [vmem:[%s0 + $0x8] sm:$0xff]
    %v14 = vlaneseq
    %v15 = vand.u32 %v14, 127
    %16 = vset.pattern.permute.xlu0 0
    %17 = vperm.xlu0 %16, %v12
    %v18 = vpop.permute.xlu0 %17
    %19 = vset.pattern.permute.xlu0 0
    %20 = vperm.xlu0 %19, %v13
    %v21 = vpop.permute.xlu0 %20
    %vm22 = vcmp.eq.s32.totalorder %v15, %v18
    %vm23 = vcmp.eq.s32.totalorder %v15, %v21
    %v24 = vsel %vm22, 1, 0
    %v25 = vsel %vm23, 1, 0
    %v26 = vcvt.s32.f32 %v24
    %v27 = vcvt.s32.f32 %v25
    %v28 = vld [vmem:[%s1] sm:$0xff]
    %v29 = vld [vmem:[%s1 + $0x8] sm:$0xff]
    %v30 = vld [vmem:[%s1 + $0x10] sm:$0xff]
    %v31 = vld [vmem:[%s1 + $0x18] sm:$0xff]
    %v32 = vld [vmem:[%s1 + $0x20] sm:$0xff]
    %v33 = vld [vmem:[%s1 + $0x28] sm:$0xff]
    %v34 = vld [vmem:[%s1 + $0x30] sm:$0xff]
    %v35 = vld [vmem:[%s1 + $0x38] sm:$0xff]
    %vm36 = vcmask 523264
    %v38 = vsel %vm36, %v26, 0
    %v41 = vsel %vm36, %v27, 0
    %43 = vmatprep.subr.mxu0 0.0
    %44 = vmatpush1.msra.mxu0 %v28
    %45 = vmatprep.subr.mxu0 0.0
    %46 = vmatpush1.msra.mxu0 %v29
    %47 = vmatprep.subr.mxu0 0.0
    %48 = vmatpush1.msra.mxu0 %v30
    %49 = vmatprep.subr.mxu0 0.0
    %50 = vmatpush1.msra.mxu0 %v31
    %51 = vmatprep.subr.mxu0 0.0
    %52 = vmatpush1.msra.mxu0 %v32
    %53 = vmatprep.subr.mxu0 0.0
    %54 = vmatpush1.msra.mxu0 %v33
    %55 = vmatprep.subr.mxu0 0.0
    %56 = vmatpush1.msra.mxu0 %v34
    %57 = vmatprep.subr.mxu0 0.0
    %58 = vmatpush1.msra.mxu0 %v35
    %59 = vmatprep.subr.mxu0 0.0
    %60 = vmatpush1.msra.mxu0 0.0
    %61 = vmatprep.subr.mxu0 0.0
    %62 = vmatpush1.msra.mxu0 0.0
    %63 = vmatprep.subr.mxu0 0.0
    %64 = vmatpush1.msra.mxu0 0.0
    %65 = vmatprep.subr.mxu0 0.0
    %66 = vmatpush1.msra.mxu0 0.0
    %67 = vmatprep.subr.mxu0 0.0
    %68 = vmatpush1.msra.mxu0 0.0
    %69 = vmatprep.subr.mxu0 0.0
    %70 = vmatpush1.msra.mxu0 0.0
    %71 = vmatprep.subr.mxu0 0.0
    %72 = vmatpush1.msra.mxu0 0.0
    %73 = vmatprep.subr.mxu0 0.0
    %74 = vmatpush1.msra.mxu0 0.0
    %75 = vmatprep.subr.mxu0 0.0
    %76 = vmatpush1.msra.mxu0 0.0
    %77 = vmatprep.subr.mxu0 0.0
    %78 = vmatpush1.msra.mxu0 0.0
    %79 = vmatprep.subr.mxu0 0.0
    %80 = vmatpush1.msra.mxu0 0.0
    %81 = vmatprep.subr.mxu0 0.0
    %82 = vmatpush1.msra.mxu0 0.0
    %83 = vmatprep.subr.mxu0 0.0
    %84 = vmatpush1.msra.mxu0 0.0
    %85 = vmatprep.subr.mxu0 0.0
    %86 = vmatpush1.msra.mxu0 0.0
    %87 = vmatprep.subr.mxu0 0.0
    %88 = vmatpush1.msra.mxu0 0.0
    %89 = vmatprep.subr.mxu0 0.0
    %90 = vmatpush1.msra.mxu0 0.0
    %91 = vmatprep.subr.mxu0 0.0
    %92 = vmatpush1.msra.mxu0 0.0
    %93 = vmatprep.subr.mxu0 0.0
    %94 = vmatpush1.msra.mxu0 0.0
    %95 = vmatprep.subr.mxu0 0.0
    %96 = vmatpush1.msra.mxu0 0.0
    %97 = vmatprep.subr.mxu0 0.0
    %98 = vmatpush1.msra.mxu0 0.0
    %99 = vmatprep.subr.mxu0 0.0
    %100 = vmatpush1.msra.mxu0 0.0
    %101 = vmatprep.subr.mxu0 0.0
    %102 = vmatpush1.msra.mxu0 0.0
    %103 = vmatprep.subr.mxu0 0.0
    %104 = vmatpush1.msra.mxu0 0.0
    %105 = vmatprep.subr.mxu0 0.0
    %106 = vmatpush1.msra.mxu0 0.0
    %107 = vmatprep.mubr.f32.mxu0 0.0
    %108 = vmatmul.mubr.f32.gmra.mrb[0].mxu0 %v38
    %v109 = vpop.f32.mrb[0].mxu0
    %v110 = vadd.f32 0.0, %v109
    %v111 = vpop.f32.mrb[0].mxu0
    %112 = vmatprep.mubr.f32.mxu0 0.0
    %113 = vmatmul.mubr.f32.gmra.mrb[0].mxu0 %v41
    %v114 = vpop.f32.mrb[0].mxu0
    %v115 = vadd.f32 0.0, %v114
    %v116 = vpop.f32.mrb[0].mxu0
    %117 = vdwg.mxu0
    %vm118 = vcmask 261120
    %119 = vst.msk [vmem:[#allocation2] sm:$0xff] %vm118, %v110
    %120 = vst.msk [vmem:[#allocation2 + $0x8] sm:$0xff] %vm118, %v115
    // Predicated region
    $region10: #{tpu_custom_call.1} parent=1 // pred_check
      _
    $region11: #{tpu_custom_call.1} parent=1 // pred_check_branch
      %122 = sbr.rel (0) target = $region13
    $region12: #{tpu_custom_call.1} parent=1 // pred_region
      %s124 = ssub.s32 256, 256
      %125 = vsyncadd [#allocation3], %s124
      %s126 = sshll.u32 [#allocation2], 4
      %s127 = int_to_ptr.vmem [resolvable:$true] %s126
      %132 = dma.vmem_to_hbm [thread:$0]  %s127, 256, %s2, [#allocation3], 128, 128, 8
    $region13: #{tpu_custom_call.1} parent=1 // pred_fallthru
      _
    // Predicated region
    $region14: #{tpu_custom_call.1} parent=1 // pred_check
      _
    $region15: #{tpu_custom_call.1} parent=1 // pred_check_branch
      %134 = sbr.rel (0) target = $region17
    $region16: #{tpu_custom_call.1} parent=1 // pred_region
      %135 = dma.done [#allocation3], 256
    $region17: #{tpu_custom_call.1} parent=1 // pred_fallthru
      _
    %136 = vsyncpa [#allocation3], 1

</llo_original>
